<compile_context>
chip_gen: v5e
topology: v5e:2x2
jax: 0.10.0
libtpu: 0.0.40
codegen_flags: <defaults>
</compile_context>

<pallas_src>
import jax
import jax.numpy as jnp
from jax.experimental import pallas as pl
from jax.experimental.pallas import tpu as pltpu


def _round_up(x, m):
    return ((x + m - 1) // m) * m


def _cdiv(a, b):
    return -(-a // b)


def _vmem_budget_bytes():
    """Generation-aware VMEM budget (v7x: 64 MiB/TC -> ~40 MiB; v5e/v6e: 128 MiB -> ~100 MiB)."""
    cap = 64 * 1024 * 1024
    try:
        info = pltpu.get_tpu_info()
        cap = int(getattr(info, "vmem_capacity_bytes", cap))
    except Exception:
        pass
    return 40 * 1024 * 1024 if cap <= 80 * 1024 * 1024 else 100 * 1024 * 1024


def _proto_kernel(scale, feat_dim, num_classes, hidden):
    F, C, H = feat_dim, num_classes, hidden

    def kernel(x_ref, wb_ref, bb_ref, alpha_ref, wip_ref, bip_ref, cen_ref,
               slab_ref, acc_ref):
        k = pl.program_id(1)

        @pl.when(k == 0)
        def _init():
            acc_ref[...] = jnp.zeros_like(acc_ref)

        # --- backbone matmul partial sum: bf16 inputs on the MXU, f32 accum ---
        acc_ref[...] += jnp.dot(x_ref[...], wb_ref[...],
                                preferred_element_type=jnp.float32)

        @pl.when(k == pl.num_programs(1) - 1)
        def _epilogue():
            h = acc_ref[...] + bb_ref[...]                           # (TB, H) f32

            # PReLU with a single shared alpha (PyTorch nn.PReLU() default)
            alpha = alpha_ref[0, 0]                                  # SMEM scalar
            p = jnp.where(h >= 0.0, h, alpha * h)

            # ip Linear(H, F) on the (otherwise idle) MXU
            feats = jnp.dot(p, wip_ref[...],
                            preferred_element_type=jnp.float32) + bip_ref[...]

            # dce_loss: -( ||f||^2 + ||c||^2 - 2 f @ centers )
            centers = cen_ref[...]                                   # (F, C)
            fic = feats[:, 0:1] * centers[0:1, :]                    # rank-1 outer products (F is tiny)
            for j in range(1, F):
                fic = fic + feats[:, j:j + 1] * centers[j:j + 1, :]
            fsq = jnp.sum(feats * feats, axis=1, keepdims=True)      # (TB, 1)
            csq = jnp.sum(centers * centers, axis=0, keepdims=True)  # (1, C)
            dist = -(fsq + csq - 2.0 * fic)                          # (TB, C)

            # outputs = log_softmax(scale * h, axis=1), all in f32
            s = scale * h
            m = jnp.max(s, axis=1, keepdims=True)
            e = jnp.exp(s - m)
            lse = jnp.log(jnp.sum(e, axis=1, keepdims=True)) + m
            outs = s - lse                                           # (TB, H)

            # Pack results with sliced VMEM stores (no lane concatenate and no
            # live (TB, SLAB_W) vreg value).  The HBM writeback is still one
            # lane-dense full-width block per batch tile via out_specs.
            slab_ref[:, 0:F] = feats
            slab_ref[:, F:F + C] = dist
            slab_ref[:, F + C:F + C + H] = outs
            pad = slab_ref.shape[1] - (F + C + H)
            if pad > 0:
                slab_ref[:, F + C + H:] = jnp.zeros(
                    (slab_ref.shape[0], pad), jnp.float32)

    return kernel


def prototype_networks_forward(x_nchw, params, *, scale=2.0):
    """params = (Wb, bb, alpha, Wip, bip, centers). Returns (features, centers, dist, outputs)."""
    Wb, bb, alpha, Wip, bip, centers = params
    B = x_nchw.shape[0]
    Din, H = Wb.shape
    F = Wip.shape[1]
    C = centers.shape[1]

    # slab width scales with H (no hard 128 cap), always a lane-dense multiple of 128
    slab_w = _round_up(F + C + H, 128)

    # --- bf16 for the dominant HBM streams (x, Wb); everything after the matmul is f32 ---
    x_flat = x_nchw.reshape(B, -1).astype(jnp.bfloat16)
    assert x_flat.shape[1] == Din
    Wb_bf = Wb.astype(jnp.bfloat16)
    bb = bb.astype(jnp.float32)
    alpha = alpha.astype(jnp.float32)
    Wip = Wip.astype(jnp.float32)
    bip = bip.astype(jnp.float32)
    centers = centers.astype(jnp.float32)

    # --- Din (reduction) tiling: decouples VMEM footprint from input width ---
    Din_p = _round_up(Din, 128)
    TK = min(Din_p, 2048)
    Din_p = _round_up(Din_p, TK)
    num_k = Din_p // TK
    if Din_p != Din:
        x_flat = jnp.pad(x_flat, ((0, 0), (0, Din_p - Din)))
        Wb_bf = jnp.pad(Wb_bf, ((0, Din_p - Din), (0, 0)))

    # --- batch tile size from a generation-aware VMEM budget ---
    budget = _vmem_budget_bytes()
    H_lanes = _round_up(H, 128)                          # lane padding of narrow buffers
    fixed = (2 * TK * H_lanes * 2                        # double-buffered Wb tile (bf16)
             + 64 * 1024                                 # resident small weights (padded tiles)
             + (1 << 20))                                # mosaic internal scratch headroom
    per_row = 2 * TK * 2 + 2 * slab_w * 4 + H_lanes * 4  # x (dbl, bf16) + slab (dbl) + f32 accumulator
    tb_budget = max(8, ((budget - fixed) // per_row) // 8 * 8)
    tb_budget = min(tb_budget, 1024)                     # diminishing returns past ~1K rows
    TB = min(tb_budget, _round_up(B, 8))                 # pad small/odd B to a multiple of 8
    if B > 8:
        # at least two balanced batch tiles so the 'parallel' axis feeds both v7x TensorCores
        TB = min(TB, _round_up(_cdiv(B, 2), 8))

    num_tiles = _cdiv(B, TB)
    Bp = num_tiles * TB
    if Bp != B:
        x_flat = jnp.pad(x_flat, ((0, Bp - B), (0, 0)))

    needed = fixed + TB * per_row
    vmem_limit = int(min(budget, max(needed + needed // 4, 4 << 20)))

    cost = pl.CostEstimate(
        flops=2 * Bp * Din_p * H + 2 * Bp * H * F + 2 * Bp * F * C + 8 * Bp * H,
        transcendentals=Bp * H + Bp,
        bytes_accessed=Bp * Din_p * 2 + Din_p * H * 2 + Bp * slab_w * 4
                       + 4 * (H + H * F + F + F * C),
    )

    slab = pl.pallas_call(
        _proto_kernel(float(scale), F, C, H),
        grid=(num_tiles, num_k),
        in_specs=[
            pl.BlockSpec((TB, TK), lambda i, k: (i, k)),           # x batch/Din tile (bf16)
            pl.BlockSpec((TK, H), lambda i, k: (k, 0)),            # backbone weight tile (bf16)
            pl.BlockSpec((1, H), lambda i, k: (0, 0)),             # backbone bias (resident)
            pl.BlockSpec((1, 1), lambda i, k: (0, 0),
                         memory_space=pltpu.MemorySpace.SMEM),     # PReLU alpha (SMEM scalar)
            pl.BlockSpec((H, F), lambda i, k: (0, 0)),             # ip weight (resident)
            pl.BlockSpec((1, F), lambda i, k: (0, 0)),             # ip bias (resident)
            pl.BlockSpec((F, C), lambda i, k: (0, 0)),             # dce centers (resident)
        ],
        out_specs=pl.BlockSpec((TB, slab_w), lambda i, k: (i, 0)),  # packed output slab
        out_shape=jax.ShapeDtypeStruct((Bp, slab_w), jnp.float32),
        scratch_shapes=[pltpu.VMEM((TB, H), jnp.float32)],          # f32 matmul accumulator
        compiler_params=pltpu.CompilerParams(
            dimension_semantics=("parallel", "arbitrary"),
            vmem_limit_bytes=vmem_limit),
        cost_estimate=cost,
    )(x_flat, Wb_bf, bb, alpha, Wip, bip, centers)

    feats = slab[:B, 0:F]
    dist = slab[:B, F:F + C]
    outs = slab[:B, F + C:F + C + H]
    return feats, centers, dist, outs


def _reference_forward(x_nchw, params, *, scale=2.0):
    """Pure-JAX reference; backbone matmul uses the same bf16 inputs as the kernel."""
    Wb, bb, alpha, Wip, bip, centers = params
    B = x_nchw.shape[0]
    x_flat = x_nchw.reshape(B, -1)
    h = jnp.dot(x_flat.astype(jnp.bfloat16), Wb.astype(jnp.bfloat16),
                preferred_element_type=jnp.float32) + bb
    p = jnp.where(h >= 0.0, h, alpha[0, 0] * h)
    feats = jnp.dot(p, Wip, preferred_element_type=jnp.float32) + bip
    fsq = jnp.sum(feats ** 2, axis=1, keepdims=True)
    csq = jnp.sum(centers ** 2, axis=0, keepdims=True)
    dist = -(fsq + csq - 2.0 * feats @ centers)
    outs = jax.nn.log_softmax(scale * h, axis=1)
    return feats, centers, dist, outs


if __name__ == "__main__":
    # Small shapes consistent with the module: NCHW input, synthetic backbone ->
    # two-dim (B, hidden) tensor, num_hidden_units(feat_dim)=2, num_classes=10, scale=2.
    B, C_in, Himg, Wimg = 2, 4, 16, 16
    Din = C_in * Himg * Wimg
    hidden = 32
    feat_dim = 2          # num_hidden_units
    num_classes = 10
    scale = 2.0

    key = jax.random.PRNGKey(0)
    kx, kwb, kwip, kbip, kcen = jax.random.split(key, 5)

    x = jax.random.normal(kx, (B, C_in, Himg, Wimg), dtype=jnp.float32)

    # Deterministic parameter init (kaiming-ish scaling; no checkpoint loading)
    # TODO(synk): the wrapped backbone `self.model` is unspecified in the PyTorch
    # module; it is synthesized here as a single flatten + Linear producing the
    # required two-dim (B, hidden) feature tensor.
    Wb = jax.random.normal(kwb, (Din, hidden), dtype=jnp.float32) * jnp.sqrt(2.0 / Din)
    bb = jnp.zeros((1, hidden), dtype=jnp.float32)
    alpha = jnp.full((1, 1), 0.25, dtype=jnp.float32)          # PReLU default init
    Wip = jax.random.normal(kwip, (hidden, feat_dim), dtype=jnp.float32) * (1.0 / jnp.sqrt(hidden))
    bip = jax.random.normal(kbip, (1, feat_dim), dtype=jnp.float32) * (1.0 / jnp.sqrt(hidden))
    centers = jax.random.normal(kcen, (feat_dim, num_classes), dtype=jnp.float32) * jnp.sqrt(2.0 / num_classes)

    params = (Wb, bb, alpha, Wip, bip, centers)

    feats, cen_out, dist, outs = prototype_networks_forward(x, params, scale=scale)
    jax.block_until_ready((feats, cen_out, dist, outs))

    # correctness check against the pure-JAX reference (same bf16 matmul inputs)
    rf, rc, rd, ro = _reference_forward(x, params, scale=scale)
    assert jnp.allclose(feats, rf, rtol=5e-4, atol=5e-4)
    assert jnp.allclose(cen_out, rc)
    assert jnp.allclose(dist, rd, rtol=5e-4, atol=5e-4)
    assert jnp.allclose(outs, ro, rtol=5e-4, atol=5e-4)

    print("KERNEL_OK")
</pallas_src>

<mosaic_0001>
module attributes {stable_mosaic.version = 11 : i64} {
  func.func @kernel(%arg0: i32, %arg1: i32, %arg2: memref<8x1024xbf16, #tpu.memory_space<vmem>>, %arg3: memref<1024x32xbf16, #tpu.memory_space<vmem>>, %arg4: memref<1x32xf32, #tpu.memory_space<vmem>>, %arg5: memref<1x1xf32, #tpu.memory_space<smem>>, %arg6: memref<32x2xf32, #tpu.memory_space<vmem>>, %arg7: memref<1x2xf32, #tpu.memory_space<vmem>>, %arg8: memref<2x10xf32, #tpu.memory_space<vmem>>, %arg9: memref<8x128xf32, #tpu.memory_space<vmem>>, %arg10: memref<8x32xf32, #tpu.memory_space<vmem>>) attributes {dimension_semantics = [#tpu.dimension_semantics<parallel>, #tpu.dimension_semantics<arbitrary>], iteration_bounds = array<i64: 1, 1>, scalar_prefetch = 0 : i64, scratch_operands = 1 : i64, tpu.core_type = #tpu.core_type<tc>, window_params = [{transform_indices = @transform_0, window_bounds = array<i64: 8, 1024>}, {transform_indices = @transform_1, window_bounds = array<i64: 1024, 32>}, {pipeline_mode = #tpu.pipeline_mode<synchronous>, transform_indices = @transform_2, window_bounds = array<i64: 1, 32>}, {transform_indices = @transform_3, window_bounds = array<i64: 1, 1>}, {pipeline_mode = #tpu.pipeline_mode<synchronous>, transform_indices = @transform_4, window_bounds = array<i64: 32, 2>}, {pipeline_mode = #tpu.pipeline_mode<synchronous>, transform_indices = @transform_5, window_bounds = array<i64: 1, 2>}, {pipeline_mode = #tpu.pipeline_mode<synchronous>, transform_indices = @transform_6, window_bounds = array<i64: 2, 10>}, {transform_indices = @transform_7, window_bounds = array<i64: 8, 128>}]} {
    %c0_i32 = arith.constant 0 : i32
    %0 = arith.cmpi eq, %arg1, %c0_i32 : i32
    %1 = arith.extui %0 : i1 to i32
    %c0_i32_0 = arith.constant 0 : i32
    %2 = arith.cmpi ne, %1, %c0_i32_0 : i32
    scf.if %2 {
      %cst_10 = arith.constant 0.000000e+00 : f32
      %12 = vector.broadcast %cst_10 : f32 to vector<8x32xf32>
      %c0_11 = arith.constant 0 : index
      %c0_12 = arith.constant 0 : index
      %13 = vector.load %arg10[%c0_11, %c0_12] : memref<8x32xf32, #tpu.memory_space<vmem>>, vector<8x32xf32>
      tpu.vector_store %arg10[%c0_11, %c0_12], %12 {strides = array<i32>} : memref<8x32xf32, #tpu.memory_space<vmem>>, vector<8x32xf32>,
    } else {
    }
    %c0 = arith.constant 0 : index
    %c0_1 = arith.constant 0 : index
    %3 = vector.load %arg10[%c0, %c0_1] : memref<8x32xf32, #tpu.memory_space<vmem>>, vector<8x32xf32>
    %c0_2 = arith.constant 0 : index
    %c0_3 = arith.constant 0 : index
    %4 = vector.load %arg2[%c0_2, %c0_3] : memref<8x1024xbf16, #tpu.memory_space<vmem>>, vector<8x1024xbf16>
    %c0_4 = arith.constant 0 : index
    %c0_5 = arith.constant 0 : index
    %5 = vector.load %arg3[%c0_4, %c0_5] : memref<1024x32xbf16, #tpu.memory_space<vmem>>, vector<1024x32xbf16>
    %cst = arith.constant dense<0.000000e+00> : vector<8x32xf32>
    %6 = tpu.matmul %4, %5, %cst {dimension_numbers = #tpu.dot_dimension_numbers<[1], [0], [0], [1], [0, 0, 1, 1], [], []>} : vector<8x1024xbf16>, vector<1024x32xbf16>, vector<8x32xf32> -> vector<8x32xf32>
    %7 = arith.addf %3, %6 : vector<8x32xf32>
    %c0_6 = arith.constant 0 : index
    %c0_7 = arith.constant 0 : index
    %8 = vector.load %arg10[%c0_6, %c0_7] : memref<8x32xf32, #tpu.memory_space<vmem>>, vector<8x32xf32>
    tpu.vector_store %arg10[%c0_6, %c0_7], %7 {strides = array<i32>} : memref<8x32xf32, #tpu.memory_space<vmem>>, vector<8x32xf32>,
    %c0_i32_8 = arith.constant 0 : i32
    %9 = arith.cmpi eq, %arg1, %c0_i32_8 : i32
    %10 = arith.extui %9 : i1 to i32
    %c0_i32_9 = arith.constant 0 : i32
    %11 = arith.cmpi ne, %10, %c0_i32_9 : i32
    scf.if %11 {
      %c0_10 = arith.constant 0 : index
      %c0_11 = arith.constant 0 : index
      %12 = vector.load %arg10[%c0_10, %c0_11] : memref<8x32xf32, #tpu.memory_space<vmem>>, vector<8x32xf32>
      %c0_12 = arith.constant 0 : index
      %c0_13 = arith.constant 0 : index
      %13 = vector.load %arg4[%c0_12, %c0_13] : memref<1x32xf32, #tpu.memory_space<vmem>>, vector<1x32xf32>
      %14 = vector.broadcast %13 : vector<1x32xf32> to vector<8x32xf32>
      %15 = arith.addf %12, %14 : vector<8x32xf32>
      %c0_14 = arith.constant 0 : index
      %c0_15 = arith.constant 0 : index
      %16 = memref.load %arg5[%c0_14, %c0_15] : memref<1x1xf32, #tpu.memory_space<smem>>
      %cst_16 = arith.constant 0.000000e+00 : f32
      %17 = vector.broadcast %cst_16 : f32 to vector<8x32xf32>
      %18 = arith.cmpf oge, %15, %17 : vector<8x32xf32>
      %19 = vector.broadcast %16 : f32 to vector<8x32xf32>
      %20 = arith.mulf %19, %15 : vector<8x32xf32>
      %21 = arith.select %18, %15, %20 : vector<8x32xi1>, vector<8x32xf32>
      %c0_17 = arith.constant 0 : index
      %c0_18 = arith.constant 0 : index
      %22 = vector.load %arg6[%c0_17, %c0_18] : memref<32x2xf32, #tpu.memory_space<vmem>>, vector<32x2xf32>
      %cst_19 = arith.constant dense<0.000000e+00> : vector<8x2xf32>
      %23 = tpu.matmul %21, %22, %cst_19 {dimension_numbers = #tpu.dot_dimension_numbers<[1], [0], [0], [1], [0, 0, 1, 1], [], []>} : vector<8x32xf32>, vector<32x2xf32>, vector<8x2xf32> -> vector<8x2xf32>
      %c0_20 = arith.constant 0 : index
      %c0_21 = arith.constant 0 : index
      %24 = vector.load %arg7[%c0_20, %c0_21] : memref<1x2xf32, #tpu.memory_space<vmem>>, vector<1x2xf32>
      %25 = vector.broadcast %24 : vector<1x2xf32> to vector<8x2xf32>
      %26 = arith.addf %23, %25 : vector<8x2xf32>
      %c0_22 = arith.constant 0 : index
      %c0_23 = arith.constant 0 : index
      %27 = vector.load %arg8[%c0_22, %c0_23] : memref<2x10xf32, #tpu.memory_space<vmem>>, vector<2x10xf32>
      %28 = vector.extract_strided_slice %26 {offsets = [0, 0], sizes = [8, 1], strides = [1, 1]} : vector<8x2xf32> to vector<8x1xf32>
      %29 = vector.extract_strided_slice %27 {offsets = [0, 0], sizes = [1, 10], strides = [1, 1]} : vector<2x10xf32> to vector<1x10xf32>
      %30 = vector.broadcast %28 : vector<8x1xf32> to vector<8x10xf32>
      %31 = vector.broadcast %29 : vector<1x10xf32> to vector<8x10xf32>
      %32 = arith.mulf %30, %31 : vector<8x10xf32>
      %33 = vector.extract_strided_slice %26 {offsets = [0, 1], sizes = [8, 1], strides = [1, 1]} : vector<8x2xf32> to vector<8x1xf32>
      %34 = vector.extract_strided_slice %27 {offsets = [1, 0], sizes = [1, 10], strides = [1, 1]} : vector<2x10xf32> to vector<1x10xf32>
      %35 = vector.broadcast %33 : vector<8x1xf32> to vector<8x10xf32>
      %36 = vector.broadcast %34 : vector<1x10xf32> to vector<8x10xf32>
      %37 = arith.mulf %35, %36 : vector<8x10xf32>
      %38 = arith.addf %32, %37 : vector<8x10xf32>
      %39 = arith.mulf %26, %26 : vector<8x2xf32>
      %cst_24 = arith.constant dense<0.000000e+00> : vector<8xf32>
      %40 = vector.multi_reduction <add>, %39, %cst_24 [1] : vector<8x2xf32> to vector<8xf32>
      %41 = vector.shape_cast %40 : vector<8xf32> to vector<8x1xf32>
      %42 = arith.mulf %27, %27 : vector<2x10xf32>
      %cst_25 = arith.constant dense<0.000000e+00> : vector<10xf32>
      %43 = vector.multi_reduction <add>, %42, %cst_25 [0] : vector<2x10xf32> to vector<10xf32>
      %44 = vector.shape_cast %43 : vector<10xf32> to vector<1x10xf32>
      %45 = vector.broadcast %41 : vector<8x1xf32> to vector<8x10xf32>
      %46 = vector.broadcast %44 : vector<1x10xf32> to vector<8x10xf32>
      %47 = arith.addf %45, %46 : vector<8x10xf32>
      %cst_26 = arith.constant 2.000000e+00 : f32
      %48 = vector.broadcast %cst_26 : f32 to vector<8x10xf32>
      %49 = arith.mulf %48, %38 : vector<8x10xf32>
      %50 = arith.subf %47, %49 : vector<8x10xf32>
      %cst_27 = arith.constant 0.000000e+00 : f32
      %51 = vector.broadcast %cst_27 : f32 to vector<8x10xf32>
      %52 = arith.subf %51, %50 : vector<8x10xf32>
      %cst_28 = arith.constant 2.000000e+00 : f32
      %53 = vector.broadcast %cst_28 : f32 to vector<8x32xf32>
      %54 = arith.mulf %53, %15 : vector<8x32xf32>
      %cst_29 = arith.constant dense<0xFF800000> : vector<8xf32>
      %55 = vector.multi_reduction <maximumf>, %54, %cst_29 [1] : vector<8x32xf32> to vector<8xf32>
      %56 = vector.shape_cast %55 : vector<8xf32> to vector<8x1xf32>
      %57 = vector.broadcast %56 : vector<8x1xf32> to vector<8x32xf32>
      %58 = arith.subf %54, %57 : vector<8x32xf32>
      %59 = math.exp %58 : vector<8x32xf32>
      %cst_30 = arith.constant dense<0.000000e+00> : vector<8xf32>
      %60 = vector.multi_reduction <add>, %59, %cst_30 [1] : vector<8x32xf32> to vector<8xf32>
      %61 = vector.shape_cast %60 : vector<8xf32> to vector<8x1xf32>
      %62 = math.log %61 : vector<8x1xf32>
      %63 = arith.addf %62, %56 : vector<8x1xf32>
      %64 = vector.broadcast %63 : vector<8x1xf32> to vector<8x32xf32>
      %65 = arith.subf %54, %64 : vector<8x32xf32>
      %c0_31 = arith.constant 0 : index
      %c0_32 = arith.constant 0 : index
      %66 = vector.load %arg9[%c0_31, %c0_32] : memref<8x128xf32, #tpu.memory_space<vmem>>, vector<8x2xf32>
      tpu.vector_store %arg9[%c0_31, %c0_32], %26 {strides = array<i32>} : memref<8x128xf32, #tpu.memory_space<vmem>>, vector<8x2xf32>,
      %c0_33 = arith.constant 0 : index
      %c2 = arith.constant 2 : index
      %67 = vector.load %arg9[%c0_33, %c2] : memref<8x128xf32, #tpu.memory_space<vmem>>, vector<8x10xf32>
      tpu.vector_store %arg9[%c0_33, %c2], %52 {strides = array<i32>} : memref<8x128xf32, #tpu.memory_space<vmem>>, vector<8x10xf32>,
      %c0_34 = arith.constant 0 : index
      %c12 = arith.constant 12 : index
      %68 = vector.load %arg9[%c0_34, %c12] : memref<8x128xf32, #tpu.memory_space<vmem>>, vector<8x32xf32>
      tpu.vector_store %arg9[%c0_34, %c12], %65 {strides = array<i32>} : memref<8x128xf32, #tpu.memory_space<vmem>>, vector<8x32xf32>,
      %cst_35 = arith.constant 0.000000e+00 : f32
      %69 = vector.broadcast %cst_35 : f32 to vector<8x84xf32>
      %c0_36 = arith.constant 0 : index
      %c44 = arith.constant 44 : index
      %70 = vector.load %arg9[%c0_36, %c44] : memref<8x128xf32, #tpu.memory_space<vmem>>, vector<8x84xf32>
      tpu.vector_store %arg9[%c0_36, %c44], %69 {strides = array<i32>} : memref<8x128xf32, #tpu.memory_space<vmem>>, vector<8x84xf32>,
    } else {
    }
    return
  }
  func.func @transform_0(%arg0: i32, %arg1: i32) -> (i32, i32) {
    %c0_i32 = arith.constant 0 : i32
    return %arg0, %arg1 : i32, i32
  }
  func.func @transform_1(%arg0: i32, %arg1: i32) -> (i32, i32) {
    %c0_i32 = arith.constant 0 : i32
    %c0_i32_0 = arith.constant 0 : i32
    return %arg1, %c0_i32 : i32, i32
  }
  func.func @transform_2(%arg0: i32, %arg1: i32) -> (i32, i32) {
    %c0_i32 = arith.constant 0 : i32
    %c0_i32_0 = arith.constant 0 : i32
    %c0_i32_1 = arith.constant 0 : i32
    return %c0_i32, %c0_i32_0 : i32, i32
  }
  func.func @transform_3(%arg0: i32, %arg1: i32) -> (i32, i32) {
    %c0_i32 = arith.constant 0 : i32
    %c0_i32_0 = arith.constant 0 : i32
    %c0_i32_1 = arith.constant 0 : i32
    return %c0_i32, %c0_i32_0 : i32, i32
  }
  func.func @transform_4(%arg0: i32, %arg1: i32) -> (i32, i32) {
    %c0_i32 = arith.constant 0 : i32
    %c0_i32_0 = arith.constant 0 : i32
    %c0_i32_1 = arith.constant 0 : i32
    return %c0_i32, %c0_i32_0 : i32, i32
  }
  func.func @transform_5(%arg0: i32, %arg1: i32) -> (i32, i32) {
    %c0_i32 = arith.constant 0 : i32
    %c0_i32_0 = arith.constant 0 : i32
    %c0_i32_1 = arith.constant 0 : i32
    return %c0_i32, %c0_i32_0 : i32, i32
  }
  func.func @transform_6(%arg0: i32, %arg1: i32) -> (i32, i32) {
    %c0_i32 = arith.constant 0 : i32
    %c0_i32_0 = arith.constant 0 : i32
    %c0_i32_1 = arith.constant 0 : i32
    return %c0_i32, %c0_i32_0 : i32, i32
  }
  func.func @transform_7(%arg0: i32, %arg1: i32) -> (i32, i32) {
    %c0_i32 = arith.constant 0 : i32
    %c0_i32_0 = arith.constant 0 : i32
    return %arg0, %c0_i32 : i32, i32
  }
}

</mosaic_0001>

<llo_original>
// kernel: tpu_custom_call.1
$region0: #{tpu_custom_call.1}
  #allocation0 [shape = 'u32[]', space=smem, size = 0x4, offset = 0x4, fixed_abs, tag = 'smem constant byte address 0x4 - core index']
  #allocation1 [shape = 'u32[72,128]{1,0:T(1,128)}', space=vmem, size = 0x9000, scoped, tag = 'internal scratch']
  #allocation2 [shape = 'f32[8,32]{1,0:T(8,128)}', space=vmem, size = 0x1000, scoped, tag = 'scratch operand']
  #allocation3 [shape = 'f32[1,1]{1,0:T(1,128)S(6)}', space=smem, size = 0x200, scoped, tag = 'scoped memory for tpu_custom_call.1']
  %s0 = inlined_call_operand.vmem [shape: bf16[8,1024], index: 0, kind: input, shape index: {}]
  %s1 = inlined_call_operand.vmem [shape: bf16[1024,32], index: 1, kind: input, shape index: {}]
  %s2 = inlined_call_operand.vmem [shape: f32[1,32], index: 2, kind: input, shape index: {}]
  %s3 = inlined_call_operand.<no memory space> [shape: f32[1,1], index: 3, kind: input, shape index: {}]
  %s4 = inlined_call_operand.vmem [shape: f32[32,2], index: 4, kind: input, shape index: {}]
  %s5 = inlined_call_operand.vmem [shape: f32[1,2], index: 5, kind: input, shape index: {}]
  %s6 = inlined_call_operand.vmem [shape: f32[2,10], index: 6, kind: input, shape index: {}]
  %s7 = inlined_call_operand.hbm [shape: f32[8,128], index: 7, kind: output, shape index: {}]
  %s8 = sld [smem:[#allocation0]]
  $region46: #{tpu_custom_call.1} parent=0
    _
  %s10 = ssub.s32 1, %s8
  %s11 = scalar_select 0, %s10, %s8
  %12 = sst [smem:[#allocation3]] %s3
  $region1: #{tpu_custom_call.1} parent=0
    #allocation4 [shape = 'u8[4096]{0}', space=vmem, size = 0x1000, scoped, tag = 'output window, operand 0, single buffered']
    #allocation5 [shape = 's32[1]{0}', space=sflag, size = 0x4, scoped, tag = 'scoped memory for tpu_custom_call.1']
    %13 = vsyncpa [#allocation5], 0
    // Predicated region
    $region2: #{tpu_custom_call.1} parent=1 // pred_check
      _
    $region3: #{tpu_custom_call.1} parent=1 // pred_check_branch
      %15 = sbr.rel (0) target = $region5
    $region4: #{tpu_custom_call.1} parent=1 // pred_region
      _
    $region5: #{tpu_custom_call.1} parent=1 // pred_fallthru
      _
    // Predicated region
    $region6: #{tpu_custom_call.1} parent=1 // pred_check
      _
    $region7: #{tpu_custom_call.1} parent=1 // pred_check_branch
      %17 = sbr.rel (0) target = $region9
    $region8: #{tpu_custom_call.1} parent=1 // pred_region
      _
    $region9: #{tpu_custom_call.1} parent=1 // pred_fallthru
      _
    // Predicated region
    $region10: #{tpu_custom_call.1} parent=1 // pred_check
      _
    $region11: #{tpu_custom_call.1} parent=1 // pred_check_branch
      %19 = sbr.rel (0) target = $region13
    $region12: #{tpu_custom_call.1} parent=1 // pred_region
      _
    $region13: #{tpu_custom_call.1} parent=1 // pred_fallthru
      _
    // Predicated region
    $region14: #{tpu_custom_call.1} parent=1 // pred_check
      _
    $region15: #{tpu_custom_call.1} parent=1 // pred_check_branch
      %21 = sbr.rel (0) target = $region17
    $region16: #{tpu_custom_call.1} parent=1 // pred_region
      _
    $region17: #{tpu_custom_call.1} parent=1 // pred_fallthru
      _
    // Predicated region
    $region18: #{tpu_custom_call.1} parent=1 // pred_check
      _
    $region19: #{tpu_custom_call.1} parent=1 // pred_check_branch
      %23 = sbr.rel (0) target = $region21
    $region20: #{tpu_custom_call.1} parent=1 // pred_region
      _
    $region21: #{tpu_custom_call.1} parent=1 // pred_fallthru
      _
    // Predicated region
    $region22: #{tpu_custom_call.1} parent=1 // pred_check
      _
    $region23: #{tpu_custom_call.1} parent=1 // pred_check_branch
      %25 = sbr.rel (0) target = $region25
    $region24: #{tpu_custom_call.1} parent=1 // pred_region
      _
    $region25: #{tpu_custom_call.1} parent=1 // pred_fallthru
      _
    // Predicated region
    $region26: #{tpu_custom_call.1} parent=1 // pred_check
      _
    $region27: #{tpu_custom_call.1} parent=1 // pred_check_branch
      %27 = sbr.rel (0) target = $region29
    $region28: #{tpu_custom_call.1} parent=1 // pred_region
      _
    $region29: #{tpu_custom_call.1} parent=1 // pred_fallthru
      _
    %p28 = scmp.eq.s32.totalorder 0, 0
    // Predicated region
    $region30: #{tpu_custom_call.1} parent=1 // pred_check
      %p29 = pneg %p28
    $region31: #{tpu_custom_call.1} parent=1 // pred_check_branch
      %31 = sbr.rel (%p29) target = $region33
    $region32: #{tpu_custom_call.1} parent=1 // pred_region
      %vm32 = vcmask 261120
      %33 = vst.msk [vmem:[#allocation2] sm:$0xff] %vm32, 0.0
    $region33: #{tpu_custom_call.1} parent=1 // pred_fallthru
      _
    %v34 = vld [vmem:[#allocation2] sm:$0xff]
    %v35 = vld [vmem:[%s0] sm:$0xff]
    %v36 = vld [vmem:[%s0 + $0x8] sm:$0xff]
    %v37 = vld [vmem:[%s0 + $0x10] sm:$0xff]
    %v38 = vld [vmem:[%s0 + $0x18] sm:$0xff]
    %v39 = vld [vmem:[%s1] sm:$0xf]
    %v40 = vld [vmem:[%s1 + $0x4] sm:$0xf]
    %v41 = vld [vmem:[%s1 + $0x8] sm:$0xf]
    %v42 = vld [vmem:[%s1 + $0xc] sm:$0xf]
    %v43 = vld [vmem:[%s1 + $0x10] sm:$0xf]
    %v44 = vld [vmem:[%s1 + $0x14] sm:$0xf]
    %v45 = vld [vmem:[%s1 + $0x18] sm:$0xf]
    %v46 = vld [vmem:[%s1 + $0x1c] sm:$0xf]
    %v47 = vld [vmem:[%s1 + $0x20] sm:$0xf]
    %v48 = vld [vmem:[%s1 + $0x24] sm:$0xf]
    %v49 = vld [vmem:[%s1 + $0x28] sm:$0xf]
    %v50 = vld [vmem:[%s1 + $0x2c] sm:$0xf]
    %v51 = vld [vmem:[%s1 + $0x30] sm:$0xf]
    %v52 = vld [vmem:[%s1 + $0x34] sm:$0xf]
    %v53 = vld [vmem:[%s1 + $0x38] sm:$0xf]
    %v54 = vld [vmem:[%s1 + $0x3c] sm:$0xf]
    %v55 = vld [vmem:[%s1 + $0x40] sm:$0xf]
    %v56 = vld [vmem:[%s1 + $0x44] sm:$0xf]
    %v57 = vld [vmem:[%s1 + $0x48] sm:$0xf]
    %v58 = vld [vmem:[%s1 + $0x4c] sm:$0xf]
    %v59 = vld [vmem:[%s1 + $0x50] sm:$0xf]
    %v60 = vld [vmem:[%s1 + $0x54] sm:$0xf]
    %v61 = vld [vmem:[%s1 + $0x58] sm:$0xf]
    %v62 = vld [vmem:[%s1 + $0x5c] sm:$0xf]
    %v63 = vld [vmem:[%s1 + $0x60] sm:$0xf]
    %v64 = vld [vmem:[%s1 + $0x64] sm:$0xf]
    %v65 = vld [vmem:[%s1 + $0x68] sm:$0xf]
    %v66 = vld [vmem:[%s1 + $0x6c] sm:$0xf]
    %v67 = vld [vmem:[%s1 + $0x70] sm:$0xf]
    %v68 = vld [vmem:[%s1 + $0x74] sm:$0xf]
    %v69 = vld [vmem:[%s1 + $0x78] sm:$0xf]
    %v70 = vld [vmem:[%s1 + $0x7c] sm:$0xf]
    %v71 = vld [vmem:[%s1 + $0x80] sm:$0xf]
    %v72 = vld [vmem:[%s1 + $0x84] sm:$0xf]
    %v73 = vld [vmem:[%s1 + $0x88] sm:$0xf]
    %v74 = vld [vmem:[%s1 + $0x8c] sm:$0xf]
    %v75 = vld [vmem:[%s1 + $0x90] sm:$0xf]
    %v76 = vld [vmem:[%s1 + $0x94] sm:$0xf]
    %v77 = vld [vmem:[%s1 + $0x98] sm:$0xf]
    %v78 = vld [vmem:[%s1 + $0x9c] sm:$0xf]
    %v79 = vld [vmem:[%s1 + $0xa0] sm:$0xf]
    %v80 = vld [vmem:[%s1 + $0xa4] sm:$0xf]
    %v81 = vld [vmem:[%s1 + $0xa8] sm:$0xf]
    %v82 = vld [vmem:[%s1 + $0xac] sm:$0xf]
    %v83 = vld [vmem:[%s1 + $0xb0] sm:$0xf]
    %v84 = vld [vmem:[%s1 + $0xb4] sm:$0xf]
    %v85 = vld [vmem:[%s1 + $0xb8] sm:$0xf]
    %v86 = vld [vmem:[%s1 + $0xbc] sm:$0xf]
    %v87 = vld [vmem:[%s1 + $0xc0] sm:$0xf]
    %v88 = vld [vmem:[%s1 + $0xc4] sm:$0xf]
    %v89 = vld [vmem:[%s1 + $0xc8] sm:$0xf]
    %v90 = vld [vmem:[%s1 + $0xcc] sm:$0xf]
    %v91 = vld [vmem:[%s1 + $0xd0] sm:$0xf]
    %v92 = vld [vmem:[%s1 + $0xd4] sm:$0xf]
    %v93 = vld [vmem:[%s1 + $0xd8] sm:$0xf]
    %v94 = vld [vmem:[%s1 + $0xdc] sm:$0xf]
    %v95 = vld [vmem:[%s1 + $0xe0] sm:$0xf]
    %v96 = vld [vmem:[%s1 + $0xe4] sm:$0xf]
    %v97 = vld [vmem:[%s1 + $0xe8] sm:$0xf]
    %v98 = vld [vmem:[%s1 + $0xec] sm:$0xf]
    %v99 = vld [vmem:[%s1 + $0xf0] sm:$0xf]
    %v100 = vld [vmem:[%s1 + $0xf4] sm:$0xf]
    %v101 = vld [vmem:[%s1 + $0xf8] sm:$0xf]
    %v102 = vld [vmem:[%s1 + $0xfc] sm:$0xf]
    %v103 = vld [vmem:[%s1 + $0x100] sm:$0xf]
    %v104 = vld [vmem:[%s1 + $0x104] sm:$0xf]
    %v105 = vld [vmem:[%s1 + $0x108] sm:$0xf]
    %v106 = vld [vmem:[%s1 + $0x10c] sm:$0xf]
    %v107 = vld [vmem:[%s1 + $0x110] sm:$0xf]
    %v108 = vld [vmem:[%s1 + $0x114] sm:$0xf]
    %v109 = vld [vmem:[%s1 + $0x118] sm:$0xf]
    %v110 = vld [vmem:[%s1 + $0x11c] sm:$0xf]
    %v111 = vld [vmem:[%s1 + $0x120] sm:$0xf]
    %v112 = vld [vmem:[%s1 + $0x124] sm:$0xf]
    %v113 = vld [vmem:[%s1 + $0x128] sm:$0xf]
    %v114 = vld [vmem:[%s1 + $0x12c] sm:$0xf]
    %v115 = vld [vmem:[%s1 + $0x130] sm:$0xf]
    %v116 = vld [vmem:[%s1 + $0x134] sm:$0xf]
    %v117 = vld [vmem:[%s1 + $0x138] sm:$0xf]
    %v118 = vld [vmem:[%s1 + $0x13c] sm:$0xf]
    %v119 = vld [vmem:[%s1 + $0x140] sm:$0xf]
    %v120 = vld [vmem:[%s1 + $0x144] sm:$0xf]
    %v121 = vld [vmem:[%s1 + $0x148] sm:$0xf]
    %v122 = vld [vmem:[%s1 + $0x14c] sm:$0xf]
    %v123 = vld [vmem:[%s1 + $0x150] sm:$0xf]
    %v124 = vld [vmem:[%s1 + $0x154] sm:$0xf]
    %v125 = vld [vmem:[%s1 + $0x158] sm:$0xf]
    %v126 = vld [vmem:[%s1 + $0x15c] sm:$0xf]
    %v127 = vld [vmem:[%s1 + $0x160] sm:$0xf]
    %v128 = vld [vmem:[%s1 + $0x164] sm:$0xf]
    %v129 = vld [vmem:[%s1 + $0x168] sm:$0xf]
    %v130 = vld [vmem:[%s1 + $0x16c] sm:$0xf]
    %v131 = vld [vmem:[%s1 + $0x170] sm:$0xf]
    %v132 = vld [vmem:[%s1 + $0x174] sm:$0xf]
    %v133 = vld [vmem:[%s1 + $0x178] sm:$0xf]
    %v134 = vld [vmem:[%s1 + $0x17c] sm:$0xf]
    %v135 = vld [vmem:[%s1 + $0x180] sm:$0xf]
    %v136 = vld [vmem:[%s1 + $0x184] sm:$0xf]
    %v137 = vld [vmem:[%s1 + $0x188] sm:$0xf]
    %v138 = vld [vmem:[%s1 + $0x18c] sm:$0xf]
    %v139 = vld [vmem:[%s1 + $0x190] sm:$0xf]
    %v140 = vld [vmem:[%s1 + $0x194] sm:$0xf]
    %v141 = vld [vmem:[%s1 + $0x198] sm:$0xf]
    %v142 = vld [vmem:[%s1 + $0x19c] sm:$0xf]
    %v143 = vld [vmem:[%s1 + $0x1a0] sm:$0xf]
    %v144 = vld [vmem:[%s1 + $0x1a4] sm:$0xf]
    %v145 = vld [vmem:[%s1 + $0x1a8] sm:$0xf]
    %v146 = vld [vmem:[%s1 + $0x1ac] sm:$0xf]
    %v147 = vld [vmem:[%s1 + $0x1b0] sm:$0xf]
    %v148 = vld [vmem:[%s1 + $0x1b4] sm:$0xf]
    %v149 = vld [vmem:[%s1 + $0x1b8] sm:$0xf]
    %v150 = vld [vmem:[%s1 + $0x1bc] sm:$0xf]
    %v151 = vld [vmem:[%s1 + $0x1c0] sm:$0xf]
    %v152 = vld [vmem:[%s1 + $0x1c4] sm:$0xf]
    %v153 = vld [vmem:[%s1 + $0x1c8] sm:$0xf]
    %v154 = vld [vmem:[%s1 + $0x1cc] sm:$0xf]
    %v155 = vld [vmem:[%s1 + $0x1d0] sm:$0xf]
    %v156 = vld [vmem:[%s1 + $0x1d4] sm:$0xf]
    %v157 = vld [vmem:[%s1 + $0x1d8] sm:$0xf]
    %v158 = vld [vmem:[%s1 + $0x1dc] sm:$0xf]
    %v159 = vld [vmem:[%s1 + $0x1e0] sm:$0xf]
    %v160 = vld [vmem:[%s1 + $0x1e4] sm:$0xf]
    %v161 = vld [vmem:[%s1 + $0x1e8] sm:$0xf]
    %v162 = vld [vmem:[%s1 + $0x1ec] sm:$0xf]
    %v163 = vld [vmem:[%s1 + $0x1f0] sm:$0xf]
    %v164 = vld [vmem:[%s1 + $0x1f4] sm:$0xf]
    %v165 = vld [vmem:[%s1 + $0x1f8] sm:$0xf]
    %v166 = vld [vmem:[%s1 + $0x1fc] sm:$0xf]
    %v171 = vunpack.c.l.b16 %v35
    %v172 = vunpack.c.h.b16 %v35
    %v173 = vunpack.c.l.b16 %v36
    %v174 = vunpack.c.h.b16 %v36
    %v175 = vunpack.c.l.b16 %v37
    %v176 = vunpack.c.h.b16 %v37
    %v177 = vunpack.c.l.b16 %v38
    %v178 = vunpack.c.h.b16 %v38
    %v179 = vpack.c.b16 %v171, %v171
    %v180 = vpack.c.b16 %v172, %v172
    %v181 = vpack.c.b16 %v173, %v173
    %v182 = vpack.c.b16 %v174, %v174
    %v183 = vpack.c.b16 %v175, %v175
    %v184 = vpack.c.b16 %v176, %v176
    %v185 = vpack.c.b16 %v177, %v177
    %v186 = vpack.c.b16 %v178, %v178
    %v323 = vunpack.c.l.b16 %v39
    %v324 = vunpack.c.l.b16 %v40
    %v325 = vunpack.c.l.b16 %v41
    %v326 = vunpack.c.l.b16 %v42
    %v327 = vunpack.c.l.b16 %v43
    %v328 = vunpack.c.l.b16 %v44
    %v329 = vunpack.c.l.b16 %v45
    %v330 = vunpack.c.l.b16 %v46
    %v331 = vunpack.c.l.b16 %v47
    %v332 = vunpack.c.l.b16 %v48
    %v333 = vunpack.c.l.b16 %v49
    %v334 = vunpack.c.l.b16 %v50
    %v335 = vunpack.c.l.b16 %v51
    %v336 = vunpack.c.l.b16 %v52
    %v337 = vunpack.c.l.b16 %v53
    %v338 = vunpack.c.l.b16 %v54
    %v339 = vunpack.c.l.b16 %v55
    %v340 = vunpack.c.l.b16 %v56
    %v341 = vunpack.c.l.b16 %v57
    %v342 = vunpack.c.l.b16 %v58
    %v343 = vunpack.c.l.b16 %v59
    %v344 = vunpack.c.l.b16 %v60
    %v345 = vunpack.c.l.b16 %v61
    %v346 = vunpack.c.l.b16 %v62
    %v347 = vunpack.c.l.b16 %v63
    %v348 = vunpack.c.l.b16 %v64
    %v349 = vunpack.c.l.b16 %v65
    %v350 = vunpack.c.l.b16 %v66
    %v351 = vunpack.c.l.b16 %v67
    %v352 = vunpack.c.l.b16 %v68
    %v353 = vunpack.c.l.b16 %v69
    %v354 = vunpack.c.l.b16 %v70
    %v355 = vunpack.c.l.b16 %v71
    %v356 = vunpack.c.l.b16 %v72
    %v357 = vunpack.c.l.b16 %v73
    %v358 = vunpack.c.l.b16 %v74
    %v359 = vunpack.c.l.b16 %v75
    %v360 = vunpack.c.l.b16 %v76
    %v361 = vunpack.c.l.b16 %v77
    %v362 = vunpack.c.l.b16 %v78
    %v363 = vunpack.c.l.b16 %v79
    %v364 = vunpack.c.l.b16 %v80
    %v365 = vunpack.c.l.b16 %v81
    %v366 = vunpack.c.l.b16 %v82
    %v367 = vunpack.c.l.b16 %v83
    %v368 = vunpack.c.l.b16 %v84
    %v369 = vunpack.c.l.b16 %v85
    %v370 = vunpack.c.l.b16 %v86
    %v371 = vunpack.c.l.b16 %v87
    %v372 = vunpack.c.l.b16 %v88
    %v373 = vunpack.c.l.b16 %v89
    %v374 = vunpack.c.l.b16 %v90
    %v375 = vunpack.c.l.b16 %v91
    %v376 = vunpack.c.l.b16 %v92
    %v377 = vunpack.c.l.b16 %v93
    %v378 = vunpack.c.l.b16 %v94
    %v379 = vunpack.c.l.b16 %v95
    %v380 = vunpack.c.l.b16 %v96
    %v381 = vunpack.c.l.b16 %v97
    %v382 = vunpack.c.l.b16 %v98
    %v383 = vunpack.c.l.b16 %v99
    %v384 = vunpack.c.l.b16 %v100
    %v385 = vunpack.c.l.b16 %v101
    %v386 = vunpack.c.l.b16 %v102
    %v387 = vunpack.c.l.b16 %v103
    %v388 = vunpack.c.l.b16 %v104
    %v389 = vunpack.c.l.b16 %v105
    %v390 = vunpack.c.l.b16 %v106
    %v391 = vunpack.c.l.b16 %v107
    %v392 = vunpack.c.l.b16 %v108
    %v393 = vunpack.c.l.b16 %v109
    %v394 = vunpack.c.l.b16 %v110
    %v395 = vunpack.c.l.b16 %v111
    %v396 = vunpack.c.l.b16 %v112
    %v397 = vunpack.c.l.b16 %v113
    %v398 = vunpack.c.l.b16 %v114
    %v399 = vunpack.c.l.b16 %v115
    %v400 = vunpack.c.l.b16 %v116
    %v401 = vunpack.c.l.b16 %v117
    %v402 = vunpack.c.l.b16 %v118
    %v403 = vunpack.c.l.b16 %v119
    %v404 = vunpack.c.l.b16 %v120
    %v405 = vunpack.c.l.b16 %v121
    %v406 = vunpack.c.l.b16 %v122
    %v407 = vunpack.c.l.b16 %v123
    %v408 = vunpack.c.l.b16 %v124
    %v409 = vunpack.c.l.b16 %v125
    %v410 = vunpack.c.l.b16 %v126
    %v411 = vunpack.c.l.b16 %v127
    %v412 = vunpack.c.l.b16 %v128
    %v413 = vunpack.c.l.b16 %v129
    %v414 = vunpack.c.l.b16 %v130
    %v415 = vunpack.c.l.b16 %v131
    %v416 = vunpack.c.l.b16 %v132
    %v417 = vunpack.c.l.b16 %v133
    %v418 = vunpack.c.l.b16 %v134
    %v419 = vunpack.c.l.b16 %v135
    %v420 = vunpack.c.l.b16 %v136
    %v421 = vunpack.c.l.b16 %v137
    %v422 = vunpack.c.l.b16 %v138
    %v423 = vunpack.c.l.b16 %v139
    %v424 = vunpack.c.l.b16 %v140
    %v425 = vunpack.c.l.b16 %v141
    %v426 = vunpack.c.l.b16 %v142
    %v427 = vunpack.c.l.b16 %v143
    %v428 = vunpack.c.l.b16 %v144
    %v429 = vunpack.c.l.b16 %v145
    %v430 = vunpack.c.l.b16 %v146
    %v431 = vunpack.c.l.b16 %v147
    %v432 = vunpack.c.l.b16 %v148
    %v433 = vunpack.c.l.b16 %v149
    %v434 = vunpack.c.l.b16 %v150
    %v435 = vunpack.c.l.b16 %v151
    %v436 = vunpack.c.l.b16 %v152
    %v437 = vunpack.c.l.b16 %v153
    %v438 = vunpack.c.l.b16 %v154
    %v439 = vunpack.c.l.b16 %v155
    %v440 = vunpack.c.l.b16 %v156
    %v441 = vunpack.c.l.b16 %v157
    %v442 = vunpack.c.l.b16 %v158
    %v443 = vunpack.c.l.b16 %v159
    %v444 = vunpack.c.l.b16 %v160
    %v445 = vunpack.c.l.b16 %v161
    %v446 = vunpack.c.l.b16 %v162
    %v447 = vunpack.c.l.b16 %v163
    %v448 = vunpack.c.l.b16 %v164
    %v449 = vunpack.c.l.b16 %v165
    %v450 = vunpack.c.l.b16 %v166
    %v451 = vpack.c.b16 %v324, %v323
    %v452 = vpack.c.b16 %v326, %v325
    %v453 = vpack.c.b16 %v328, %v327
    %v454 = vpack.c.b16 %v330, %v329
    %v455 = vpack.c.b16 %v332, %v331
    %v456 = vpack.c.b16 %v334, %v333
    %v457 = vpack.c.b16 %v336, %v335
    %v458 = vpack.c.b16 %v338, %v337
    %v459 = vpack.c.b16 %v340, %v339
    %v460 = vpack.c.b16 %v342, %v341
    %v461 = vpack.c.b16 %v344, %v343
    %v462 = vpack.c.b16 %v346, %v345
    %v463 = vpack.c.b16 %v348, %v347
    %v464 = vpack.c.b16 %v350, %v349
    %v465 = vpack.c.b16 %v352, %v351
    %v466 = vpack.c.b16 %v354, %v353
    %v467 = vpack.c.b16 %v356, %v355
    %v468 = vpack.c.b16 %v358, %v357
    %v469 = vpack.c.b16 %v360, %v359
    %v470 = vpack.c.b16 %v362, %v361
    %v471 = vpack.c.b16 %v364, %v363
    %v472 = vpack.c.b16 %v366, %v365
    %v473 = vpack.c.b16 %v368, %v367
    %v474 = vpack.c.b16 %v370, %v369
    %v475 = vpack.c.b16 %v372, %v371
    %v476 = vpack.c.b16 %v374, %v373
    %v477 = vpack.c.b16 %v376, %v375
    %v478 = vpack.c.b16 %v378, %v377
    %v479 = vpack.c.b16 %v380, %v379
    %v480 = vpack.c.b16 %v382, %v381
    %v481 = vpack.c.b16 %v384, %v383
    %v482 = vpack.c.b16 %v386, %v385
    %v483 = vpack.c.b16 %v388, %v387
    %v484 = vpack.c.b16 %v390, %v389
    %v485 = vpack.c.b16 %v392, %v391
    %v486 = vpack.c.b16 %v394, %v393
    %v487 = vpack.c.b16 %v396, %v395
    %v488 = vpack.c.b16 %v398, %v397
    %v489 = vpack.c.b16 %v400, %v399
    %v490 = vpack.c.b16 %v402, %v401
    %v491 = vpack.c.b16 %v404, %v403
    %v492 = vpack.c.b16 %v406, %v405
    %v493 = vpack.c.b16 %v408, %v407
    %v494 = vpack.c.b16 %v410, %v409
    %v495 = vpack.c.b16 %v412, %v411
    %v496 = vpack.c.b16 %v414, %v413
    %v497 = vpack.c.b16 %v416, %v415
    %v498 = vpack.c.b16 %v418, %v417
    %v499 = vpack.c.b16 %v420, %v419
    %v500 = vpack.c.b16 %v422, %v421
    %v501 = vpack.c.b16 %v424, %v423
    %v502 = vpack.c.b16 %v426, %v425
    %v503 = vpack.c.b16 %v428, %v427
    %v504 = vpack.c.b16 %v430, %v429
    %v505 = vpack.c.b16 %v432, %v431
    %v506 = vpack.c.b16 %v434, %v433
    %v507 = vpack.c.b16 %v436, %v435
    %v508 = vpack.c.b16 %v438, %v437
    %v509 = vpack.c.b16 %v440, %v439
    %v510 = vpack.c.b16 %v442, %v441
    %v511 = vpack.c.b16 %v444, %v443
    %v512 = vpack.c.b16 %v446, %v445
    %v513 = vpack.c.b16 %v448, %v447
    %v514 = vpack.c.b16 %v450, %v449
    %579 = vmatpush.bf16.msra.mxu0 %v458
    %580 = vmatpush.bf16.msra.mxu0 %v457
    %581 = vmatpush.bf16.msra.mxu0 %v456
    %582 = vmatpush.bf16.msra.mxu0 %v455
    %583 = vmatpush.bf16.msra.mxu0 %v454
    %584 = vmatpush.bf16.msra.mxu0 %v453
    %585 = vmatpush.bf16.msra.mxu0 %v452
    %586 = vmatpush.bf16.msra.mxu0 %v451
    %587 = vmatmul.bf16.gmra.mxu0 %v179
    %v588 = vpop.f32.mrf.mxu0
    %v589 = vadd.f32 0.0, %v588
    %v590 = vpop.f32.mrf.mxu0
    %591 = vdwg.mxu0
    %592 = vmatpush.bf16.msra.mxu0 %v466
    %593 = vmatpush.bf16.msra.mxu0 %v465
    %594 = vmatpush.bf16.msra.mxu0 %v464
    %595 = vmatpush.bf16.msra.mxu0 %v463
    %596 = vmatpush.bf16.msra.mxu0 %v462
    %597 = vmatpush.bf16.msra.mxu0 %v461
    %598 = vmatpush.bf16.msra.mxu0 %v460
    %599 = vmatpush.bf16.msra.mxu0 %v459
    %600 = vmatmul.bf16.gmra.mxu0 %v180
    %v601 = vpop.f32.mrf.mxu0
    %v602 = vadd.f32 %v589, %v601
    %v603 = vpop.f32.mrf.mxu0
    %604 = vdwg.mxu0
    %605 = vmatpush.bf16.msra.mxu0 %v474
    %606 = vmatpush.bf16.msra.mxu0 %v473
    %607 = vmatpush.bf16.msra.mxu0 %v472
    %608 = vmatpush.bf16.msra.mxu0 %v471
    %609 = vmatpush.bf16.msra.mxu0 %v470
    %610 = vmatpush.bf16.msra.mxu0 %v469
    %611 = vmatpush.bf16.msra.mxu0 %v468
    %612 = vmatpush.bf16.msra.mxu0 %v467
    %613 = vmatmul.bf16.gmra.mxu0 %v181
    %v614 = vpop.f32.mrf.mxu0
    %v615 = vadd.f32 %v602, %v614
    %v616 = vpop.f32.mrf.mxu0
    %617 = vdwg.mxu0
    %618 = vmatpush.bf16.msra.mxu0 %v482
    %619 = vmatpush.bf16.msra.mxu0 %v481
    %620 = vmatpush.bf16.msra.mxu0 %v480
    %621 = vmatpush.bf16.msra.mxu0 %v479
    %622 = vmatpush.bf16.msra.mxu0 %v478
    %623 = vmatpush.bf16.msra.mxu0 %v477
    %624 = vmatpush.bf16.msra.mxu0 %v476
    %625 = vmatpush.bf16.msra.mxu0 %v475
    %626 = vmatmul.bf16.gmra.mxu0 %v182
    %v627 = vpop.f32.mrf.mxu0
    %v628 = vadd.f32 %v615, %v627
    %v629 = vpop.f32.mrf.mxu0
    %630 = vdwg.mxu0
    %631 = vmatpush.bf16.msra.mxu0 %v490
    %632 = vmatpush.bf16.msra.mxu0 %v489
    %633 = vmatpush.bf16.msra.mxu0 %v488
    %634 = vmatpush.bf16.msra.mxu0 %v487
    %635 = vmatpush.bf16.msra.mxu0 %v486
    %636 = vmatpush.bf16.msra.mxu0 %v485
    %637 = vmatpush.bf16.msra.mxu0 %v484
    %638 = vmatpush.bf16.msra.mxu0 %v483
    %639 = vmatmul.bf16.gmra.mxu0 %v183
    %v640 = vpop.f32.mrf.mxu0
    %v641 = vadd.f32 %v628, %v640
    %v642 = vpop.f32.mrf.mxu0
    %643 = vdwg.mxu0
    %644 = vmatpush.bf16.msra.mxu0 %v498
    %645 = vmatpush.bf16.msra.mxu0 %v497
    %646 = vmatpush.bf16.msra.mxu0 %v496
    %647 = vmatpush.bf16.msra.mxu0 %v495
    %648 = vmatpush.bf16.msra.mxu0 %v494
    %649 = vmatpush.bf16.msra.mxu0 %v493
    %650 = vmatpush.bf16.msra.mxu0 %v492
    %651 = vmatpush.bf16.msra.mxu0 %v491
    %652 = vmatmul.bf16.gmra.mxu0 %v184
    %v653 = vpop.f32.mrf.mxu0
    %v654 = vadd.f32 %v641, %v653
    %v655 = vpop.f32.mrf.mxu0
    %656 = vdwg.mxu0
    %657 = vmatpush.bf16.msra.mxu0 %v506
    %658 = vmatpush.bf16.msra.mxu0 %v505
    %659 = vmatpush.bf16.msra.mxu0 %v504
    %660 = vmatpush.bf16.msra.mxu0 %v503
    %661 = vmatpush.bf16.msra.mxu0 %v502
    %662 = vmatpush.bf16.msra.mxu0 %v501
    %663 = vmatpush.bf16.msra.mxu0 %v500
    %664 = vmatpush.bf16.msra.mxu0 %v499
    %665 = vmatmul.bf16.gmra.mxu0 %v185
    %v666 = vpop.f32.mrf.mxu0
    %v667 = vadd.f32 %v654, %v666
    %v668 = vpop.f32.mrf.mxu0
    %669 = vdwg.mxu0
    %670 = vmatpush.bf16.msra.mxu0 %v514
    %671 = vmatpush.bf16.msra.mxu0 %v513
    %672 = vmatpush.bf16.msra.mxu0 %v512
    %673 = vmatpush.bf16.msra.mxu0 %v511
    %674 = vmatpush.bf16.msra.mxu0 %v510
    %675 = vmatpush.bf16.msra.mxu0 %v509
    %676 = vmatpush.bf16.msra.mxu0 %v508
    %677 = vmatpush.bf16.msra.mxu0 %v507
    %678 = vmatmul.bf16.gmra.mxu0 %v186
    %v679 = vpop.f32.mrf.mxu0
    %v680 = vadd.f32 %v667, %v679
    %v681 = vpop.f32.mrf.mxu0
    %682 = vdwg.mxu0
    %v683 = vadd.f32 %v34, %v680
    %vm684 = vcmask 261120
    %685 = vst.msk [vmem:[#allocation2] sm:$0xff] %vm684, %v683
    // Predicated region
    $region34: #{tpu_custom_call.1} parent=1 // pred_check
      %p686 = pneg %p28
    $region35: #{tpu_custom_call.1} parent=1 // pred_check_branch
      %688 = sbr.rel (%p686) target = $region37
    $region36: #{tpu_custom_call.1} parent=1 // pred_region
      %v689 = vld [vmem:[#allocation2] sm:$0xff]
      %v690 = vld [vmem:[%s2] sm:$0x1]
      %v692 = vperm.slane %v690, 0
      %v694 = vadd.f32 %v689, %v692
      %s695 = sld [smem:[#allocation3]]
      %vm696 = vcmp.ge.f32.partialorder %v694, 0.0
      %v697 = vstv %s695
      %v698 = vmul.f32 %v697, %v694
      %v699 = vsel %vm696, %v694, %v698
      %v700 = vld [vmem:[%s4] sm:$0xff]
      %v701 = vld [vmem:[%s4 + $0x8] sm:$0xff]
      %v702 = vld [vmem:[%s4 + $0x10] sm:$0xff]
      %v703 = vld [vmem:[%s4 + $0x18] sm:$0xff]
      %v704 = vld [vmem:[%s5] sm:$0x1]
      %v706 = vperm.slane %v704, 0
      %v709 = vsel %vm684, %v699, 0
      %711 = vmatpush.msra.mxu0 0.0
      %712 = vmatpush.msra.mxu0 0.0
      %713 = vmatpush.msra.mxu0 0.0
      %714 = vmatpush.msra.mxu0 0.0
      %715 = vmatpush.msra.mxu0 0.0
      %716 = vmatpush.msra.mxu0 0.0
      %717 = vmatpush.msra.mxu0 0.0
      %718 = vmatpush.msra.mxu0 0.0
      %719 = vmatpush.msra.mxu0 0.0
      %720 = vmatpush.msra.mxu0 0.0
      %721 = vmatpush.msra.mxu0 0.0
      %722 = vmatpush.msra.mxu0 0.0
      %723 = vmatpush.msra.mxu0 %v703
      %724 = vmatpush.msra.mxu0 %v702
      %725 = vmatpush.msra.mxu0 %v701
      %726 = vmatpush.msra.mxu0 %v700
      %727 = vmatmul.f32.gmra.mxu0 %v709
      %v728 = vpop.f32.mrf.mxu0
      %v729 = vadd.f32 %v706, %v728
      %730 = vdwg.mxu0
      %v731 = vld [vmem:[%s6] sm:$0x3]
      %733 = vset.pattern.permute.xlu0 0
      %734 = vperm.xlu0 %733, %v729
      %v735 = vpop.permute.xlu0 %734
      %v737 = vperm.slane %v731, 0
      %v738 = vmul.f32 %v735, %v737
      %739 = vset.pattern.permute.xlu0 1
      %740 = vperm.xlu0 %739, %v729
      %v741 = vpop.permute.xlu0 %740
      %v743 = vperm.slane %v731, 1
      %v744 = vmul.f32 %v741, %v743
      %v745 = vadd.f32 %v738, %v744
      %v746 = vmul.f32 %v729, %v729
      %vm747 = vcmask 15360
      %v748 = vsel %vm747, %v746, 0.0
      %749 = vadd.xlane.f32.xlu0 %v748
      %v750 = vpop.xlane.xlu0 %749
      %v751 = vmul.f32 %v731, %v731
      %vm752 = vcmask 74752
      %v753 = vsel %vm752, %v751, 0.0
      %v754 = vrot.slane %v753, 4
      %v755 = vadd.f32 %v753, %v754
      %v756 = vrot.slane %v755, 2
      %v757 = vadd.f32 %v755, %v756
      %v758 = vrot.slane %v757, 1
      %v759 = vadd.f32 %v757, %v758
      %v760 = vadd.f32 %v750, %v759
      %v761 = vmul.f32 %v745, 2.0
      %v762 = vsub.f32 %v760, %v761
      %v763 = vsub.f32 0.0, %v762
      %v764 = vmul.f32 %v694, 2.0
      %v765 = vsel %vm684, %v764, -inf
      %766 = vmax.xlane.f32.xlu0 %v765
      %v767 = vpop.xlane.xlu0 %766
      %v768 = vsub.f32 %v764, %v767
      %v769 = vmul.f32 %v768, 1.442695
      %v770 = vpow.pop %v769
      %v771 = vsel %vm684, %v770, 0.0
      %772 = vadd.xlane.f32.xlu0 %v771
      %v773 = vpop.xlane.xlu0 %772
      %v774 = vlog2.pop %v773
      %v775 = vmul.f32 %v774, 0.6931472
      %v776 = vadd.f32 %v775, %v767
      %v777 = vsub.f32 %v764, %v776
      %778 = vst.msk [vmem:[#allocation4] sm:$0xff] %vm747, %v729
      %780 = vrot.lane.b32.xlu0 %v763, 2
      %v781 = vpop.permute.xlu0 %780
      %vm783 = vcmask 97296
      %784 = vst.msk [vmem:[#allocation4] sm:$0xff] %vm783, %v781
      %786 = vrot.lane.b32.xlu0 %v777, 12
      %v787 = vpop.permute.xlu0 %786
      %vm789 = vcmask 359520
      %790 = vst.msk [vmem:[#allocation4] sm:$0xff] %vm789, %v787
      %vm791 = vcmask 1047904
      %792 = vst.msk [vmem:[#allocation4] sm:$0xff] %vm791, 0.0
    $region37: #{tpu_custom_call.1} parent=1 // pred_fallthru
      _
    // Predicated region
    $region38: #{tpu_custom_call.1} parent=1 // pred_check
      _
    $region39: #{tpu_custom_call.1} parent=1 // pred_check_branch
      %794 = sbr.rel (0) target = $region41
    $region40: #{tpu_custom_call.1} parent=1 // pred_region
      %796 = vsyncadd [#allocation5], 0
      %s798 = sshll.u32 [#allocation4], 4
      %s799 = int_to_ptr.vmem [resolvable:$true] %s798
      %s800 = sshll.u32 %s7, 4
      %s801 = int_to_ptr.hbm [resolvable:$true] %s800
      %803 = dma.vmem_to_hbm [thread:$0]  %s799, 128, %s801, [#allocation5]
    $region41: #{tpu_custom_call.1} parent=1 // pred_fallthru
      _
    // Predicated region
    $region42: #{tpu_custom_call.1} parent=1 // pred_check
      _
    $region43: #{tpu_custom_call.1} parent=1 // pred_check_branch
      %805 = sbr.rel (0) target = $region45
    $region44: #{tpu_custom_call.1} parent=1 // pred_region
      %807 = dma.done [#allocation5], 128
    $region45: #{tpu_custom_call.1} parent=1 // pred_fallthru
      _
    %808 = vsyncpa [#allocation5], 1

</llo_original>
